<compile_context>
chip_gen: v5e
topology: v5e:2x2
jax: 0.10.0
libtpu: 0.0.40
codegen_flags: <defaults>
</compile_context>

<pallas_src>
import functools

import jax
import jax.numpy as jnp
from jax.experimental import pallas as pl
from jax.experimental.pallas import tpu as pltpu


# ---------------------------------------------------------------------------
# Schedules (plain JAX glue, mirrors torch ddpm_schedules exactly)
# ---------------------------------------------------------------------------
def ddpm_schedules(beta1, beta2, T):
    assert beta1 < beta2 < 1.0, "beta1 and beta2 must be in (0, 1)"
    beta = (beta2 - beta1) * jnp.arange(0, T + 1, dtype=jnp.float32) / T + beta1
    sqrt_beta = jnp.sqrt(beta)
    alpha = 1.0 - beta
    log_alpha = jnp.log(alpha)
    alphabar = jnp.exp(jnp.cumsum(log_alpha, axis=0))
    sqrt_alphabar = jnp.sqrt(alphabar)
    one_over_sqrt_alpha = 1.0 / jnp.sqrt(alpha)
    sqrt_one_minus_alphabar = jnp.sqrt(1.0 - alphabar)
    one_minus_alpha_over_sqrt_one_minus_alphabar = (1.0 - alpha) / sqrt_one_minus_alphabar
    one_over_sqrt_alphabar = 1.0 / sqrt_alphabar
    sqrt_one_minus_alpha = jnp.sqrt(1.0 - alpha)
    return {
        "alpha": alpha,
        "one_over_sqrt_alpha": one_over_sqrt_alpha,
        "sqrt_beta": sqrt_beta,
        "alphabar": alphabar,
        "sqrt_alphabar": sqrt_alphabar,
        "sqrt_one_minus_alphabar": sqrt_one_minus_alphabar,
        "one_minus_alpha_over_sqrt_one_minus_alphabar": one_minus_alpha_over_sqrt_one_minus_alphabar,
        "one_over_sqrt_alphabar": one_over_sqrt_alphabar,
        "sqrt_one_minus_alpha": sqrt_one_minus_alpha,
    }


# ---------------------------------------------------------------------------
# One-time setup: fold the *2-1 image rescale into the packed weights and
# pack the schedule tables (+ b2) into one 1-D scalar-prefetch array.
# ---------------------------------------------------------------------------
def prepare_packed(params, sched):
    w1aT, w1b, b1, temb, w2, b2 = params
    # x*2-1 folded into weights: sum_c w[k,c]*(2*img[c]-1)
    #   = sum_c (2*w[k,c])*img[c] - sum_c w[k,c]
    w1aT_f = 2.0 * w1aT                                      # (Hd, C_img)
    b1_f = b1 - jnp.sum(w1aT, axis=1, keepdims=True)         # (Hd, 1)
    wpack = jnp.concatenate([w1aT_f, w1b, b1_f, temb, w2], axis=1)  # (Hd, C_img+4)
    sched_pack = jnp.concatenate([
        sched["sqrt_alphabar"],                              # [0 : T+1]
        sched["sqrt_one_minus_alphabar"],                    # [T+1 : 2(T+1)]
        jnp.reshape(b2, (1,)).astype(jnp.float32),           # [2(T+1)]
    ])
    return wpack, sched_pack


# ---------------------------------------------------------------------------
# Pallas kernel: whole batch in one grid step, lane axis = H*W.
#   per-sample schedule coefficients read from SMEM (scalar prefetch tables)
#   -> forward diffusion noising (depth*2-1 folded into scalars)
#   -> synthetic nn_model (1x1-conv MLP + time conditioning, VPU only; the
#      image*2-1 rescale is pre-folded into the packed weights)
#   -> squared error vs. noise, reduced over batch in-kernel
#   -> one lane-dense (1, 128) partial-SSE row.
# ---------------------------------------------------------------------------
def ddpm_fwd_kernel(ts_ref,     # SMEM prefetch (B,) int32: per-sample timestep
                    sp_ref,     # SMEM prefetch (2*(n_T+1)+1,) f32: [sqrt_ab | sqrt_1m_ab | b2]
                    img_ref,    # VMEM (B, C_img, HW)
                    dep_ref,    # VMEM (B, 1, HW)
                    noi_ref,    # VMEM (B, 1, HW)
                    wpack_ref,  # VMEM (Hd, C_img + 4): [2*w1aT | w1b | b1' | temb | w2]
                    sse_ref,    # VMEM out (1, 128): batch-summed partial SSE (lane-dense)
                    *, n_T):
    B, C_img, HW = img_ref.shape
    T1 = n_T + 1
    inv_nT = 1.0 / n_T

    Wp = wpack_ref[...]                                      # (Hd, C_img + 4)
    w1b = Wp[:, C_img:C_img + 1]                             # (Hd, 1)
    b1p = Wp[:, C_img + 1:C_img + 2]                         # (Hd, 1)
    temb = Wp[:, C_img + 2:C_img + 3]                        # (Hd, 1)
    w2 = Wp[:, C_img + 3:C_img + 4]                          # (Hd, 1)
    b2 = sp_ref[2 * T1]                                      # scalar

    sq_total = None
    for b in range(B):                                       # static unroll over batch
        t = ts_ref[b]                                        # int32 scalar (SMEM)
        sa = sp_ref[t]                                       # sqrt(alphabar_t)
        so = sp_ref[T1 + t]                                  # sqrt(1 - alphabar_t)
        tn = t.astype(jnp.float32) * inv_nT                  # t / n_T

        d = dep_ref[b]                                       # (1, HW)
        nz = noi_ref[b]                                      # (1, HW)
        x = img_ref[b]                                       # (C_img, HW)

        # forward diffusion with depth*2-1 folded into the scalars:
        #   y_t = sa*(2*d - 1) + so*nz = (2*sa)*d + so*nz - sa
        y_t = (2.0 * sa) * d + so * nz - sa                  # (1, HW)

        # Hidden layer of the synthetic denoiser on concat([x, y_t]) channels.
        # K=3 "matmul" as broadcast FMAs on the VPU (no degenerate MXU op);
        # image*2-1 already folded into Wp columns / b1p.
        h = w1b * y_t + (b1p + tn * temb)                    # (Hd, HW)
        for c in range(C_img):                               # static unroll, C_img=3
            h = h + Wp[:, c:c + 1] * x[c:c + 1, :]
        h = jnp.maximum(h, 0.0)

        # Output projection (N=1): sublane reduction over hidden, not MXU.
        pred = jnp.sum(w2 * h, axis=0, keepdims=True) + b2   # (1, HW)

        diff = nz - pred
        sq = diff * diff                                     # (1, HW)
        sq_total = sq if sq_total is None else sq_total + sq

    # Fold HW lanes down to one 128-wide lane-dense row; single store.
    acc = sq_total[:, 0:128]
    for i in range(1, HW // 128):
        acc = acc + sq_total[:, i * 128:(i + 1) * 128]
    sse_ref[...] = acc


# ---------------------------------------------------------------------------
# Wrapper
# ---------------------------------------------------------------------------
@functools.partial(jax.jit, static_argnames=("n_T",))
def ddpm_forward_loss(image_x, depth_y, noise, ts, sched_pack, wpack, *, n_T):
    B, C_img, H, W = image_x.shape
    HW = H * W
    assert HW % 128 == 0, "H*W must be a multiple of 128 for the lane-dense layout"
    Hd = wpack.shape[0]

    # NCHW -> (B, C, HW): pure reshapes, no transpose over HBM.
    img_f = image_x.reshape(B, C_img, HW)
    dep_f = depth_y.reshape(B, 1, HW)
    noi_f = noise.reshape(B, 1, HW)

    sse_part = pl.pallas_call(
        functools.partial(ddpm_fwd_kernel, n_T=n_T),
        out_shape=jax.ShapeDtypeStruct((1, 128), jnp.float32),
        grid_spec=pltpu.PrefetchScalarGridSpec(
            num_scalar_prefetch=2,
            grid=(1,),
            in_specs=[
                pl.BlockSpec((B, C_img, HW), lambda i, ts, sp: (0, 0, 0)),
                pl.BlockSpec((B, 1, HW), lambda i, ts, sp: (0, 0, 0)),
                pl.BlockSpec((B, 1, HW), lambda i, ts, sp: (0, 0, 0)),
                pl.BlockSpec((Hd, C_img + 4), lambda i, ts, sp: (0, 0)),
            ],
            out_specs=pl.BlockSpec((1, 128), lambda i, ts, sp: (0, 0)),
        ),
        compiler_params=pltpu.CompilerParams(
            dimension_semantics=("arbitrary",)),
    )(ts.astype(jnp.int32), sched_pack, img_f, dep_f, noi_f, wpack)

    # criterion = MSELoss (mean over all elements of the (B, 1, H, W) noise)
    return jnp.sum(sse_part) / (B * HW)


# ---------------------------------------------------------------------------
# Pure-JAX reference for correctness checking (un-folded original semantics)
# ---------------------------------------------------------------------------
def reference_loss(image_x, depth_y, noise, ts, sched, params, n_T):
    w1aT, w1b, b1, temb, w2, b2 = params
    x = image_x * 2.0 - 1.0
    y = depth_y * 2.0 - 1.0
    sa = sched["sqrt_alphabar"][ts][:, None, None, None]
    so = sched["sqrt_one_minus_alphabar"][ts][:, None, None, None]
    y_t = sa * y + so * noise
    B, C, H, W = x.shape
    xf = x.reshape(B, C, H * W)
    yf = y_t.reshape(B, 1, H * W)
    tn = (ts.astype(jnp.float32) / n_T)[:, None, None]
    h = (jnp.einsum("kc,bcp->bkp", w1aT, xf)
         + w1b[None] * yf + b1[None] + tn * temb[None])
    h = jnp.maximum(h, 0.0)
    pred = jnp.sum(w2[None] * h, axis=1, keepdims=True) + b2
    nf = noise.reshape(B, 1, H * W)
    return jnp.mean((nf - pred) ** 2)


if __name__ == "__main__":
    key = jax.random.PRNGKey(0)
    keys = jax.random.split(key, 8)

    B, C_img, H, W = 2, 3, 16, 16
    hidden = 32
    n_T = 100
    betas = (1e-4, 0.02)

    # inputs (the torch forward samples _ts ~ randint and noise ~ randn; here
    # that randomness is drawn deterministically from PRNGKey(0) and passed in)
    image_x = jax.random.uniform(keys[0], (B, C_img, H, W), jnp.float32)
    depth_y = jax.random.uniform(keys[1], (B, 1, H, W), jnp.float32)
    ts = jax.random.randint(keys[2], (B,), 1, n_T + 1)
    noise = jax.random.normal(keys[3], (B, 1, H, W), jnp.float32)

    # deterministic synthetic nn_model parameters (1x1-conv MLP), stored in the
    # transposed (hidden-major) layout the kernel consumes directly.
    C_in = C_img + 1
    w1 = 0.1 * jax.random.normal(keys[4], (C_in, hidden), jnp.float32)
    w1aT = w1[:C_img].T                                             # (hidden, C_img)
    w1b = w1[C_img:].T                                              # (hidden, 1)
    b1 = 0.01 * jnp.arange(hidden, dtype=jnp.float32).reshape(hidden, 1)
    temb = 0.1 * jax.random.normal(keys[5], (1, hidden), jnp.float32).T  # (hidden, 1)
    w2 = 0.1 * jax.random.normal(keys[6], (hidden, 1), jnp.float32)      # (hidden, 1)
    b2 = jnp.zeros((), jnp.float32)
    params = (w1aT, w1b, b1, temb, w2, b2)

    sched = ddpm_schedules(betas[0], betas[1], n_T)
    wpack, sched_pack = prepare_packed(params, sched)   # one-time setup folding

    loss = ddpm_forward_loss(image_x, depth_y, noise, ts, sched_pack, wpack, n_T=n_T)
    loss = jax.block_until_ready(loss)

    ref = reference_loss(image_x, depth_y, noise, ts, sched, params, n_T)
    assert jnp.allclose(loss, ref, rtol=1e-5, atol=1e-5), (loss, ref)
    print("KERNEL_OK")
</pallas_src>

<mosaic_0001>
module attributes {stable_mosaic.version = 11 : i64} {
  func.func @ddpm_fwd_kernel(%arg0: i32, %arg1: memref<2xi32, #tpu.memory_space<smem>>, %arg2: memref<203xf32, #tpu.memory_space<smem>>, %arg3: memref<2x3x256xf32, #tpu.memory_space<vmem>>, %arg4: memref<2x1x256xf32, #tpu.memory_space<vmem>>, %arg5: memref<2x1x256xf32, #tpu.memory_space<vmem>>, %arg6: memref<32x7xf32, #tpu.memory_space<vmem>>, %arg7: memref<1x128xf32, #tpu.memory_space<vmem>>) attributes {dimension_semantics = [#tpu.dimension_semantics<arbitrary>], iteration_bounds = array<i64: 1>, scalar_prefetch = 2 : i64, scratch_operands = 0 : i64, tpu.core_type = #tpu.core_type<tc>, window_params = [{pipeline_mode = #tpu.pipeline_mode<synchronous>, transform_indices = @transform_0, window_bounds = array<i64: 2, 3, 256>}, {pipeline_mode = #tpu.pipeline_mode<synchronous>, transform_indices = @transform_1, window_bounds = array<i64: 2, 1, 256>}, {pipeline_mode = #tpu.pipeline_mode<synchronous>, transform_indices = @transform_2, window_bounds = array<i64: 2, 1, 256>}, {pipeline_mode = #tpu.pipeline_mode<synchronous>, transform_indices = @transform_3, window_bounds = array<i64: 32, 7>}, {pipeline_mode = #tpu.pipeline_mode<synchronous>, transform_indices = @transform_4, window_bounds = array<i64: 1, 128>}]} {
    %c0 = arith.constant 0 : index
    %c0_0 = arith.constant 0 : index
    %0 = vector.load %arg6[%c0, %c0_0] : memref<32x7xf32, #tpu.memory_space<vmem>>, vector<32x7xf32>
    %1 = vector.extract_strided_slice %0 {offsets = [0, 3], sizes = [32, 1], strides = [1, 1]} : vector<32x7xf32> to vector<32x1xf32>
    %2 = vector.extract_strided_slice %0 {offsets = [0, 4], sizes = [32, 1], strides = [1, 1]} : vector<32x7xf32> to vector<32x1xf32>
    %3 = vector.extract_strided_slice %0 {offsets = [0, 5], sizes = [32, 1], strides = [1, 1]} : vector<32x7xf32> to vector<32x1xf32>
    %4 = vector.extract_strided_slice %0 {offsets = [0, 6], sizes = [32, 1], strides = [1, 1]} : vector<32x7xf32> to vector<32x1xf32>
    %c202 = arith.constant 202 : index
    %5 = memref.load %arg2[%c202] : memref<203xf32, #tpu.memory_space<smem>>
    %c0_1 = arith.constant 0 : index
    %6 = memref.load %arg1[%c0_1] : memref<2xi32, #tpu.memory_space<smem>>
    %7 = arith.index_cast %6 : i32 to index
    %8 = memref.load %arg2[%7] : memref<203xf32, #tpu.memory_space<smem>>
    %c101_i32 = arith.constant 101 : i32
    %9 = arith.addi %c101_i32, %6 : i32
    %10 = arith.index_cast %9 : i32 to index
    %11 = memref.load %arg2[%10] : memref<203xf32, #tpu.memory_space<smem>>
    %12 = arith.sitofp %6 : i32 to f32
    %cst = arith.constant 0.00999999977 : f32
    %13 = arith.mulf %12, %cst : f32
    %c0_2 = arith.constant 0 : index
    %c0_3 = arith.constant 0 : index
    %c0_4 = arith.constant 0 : index
    %14 = vector.load %arg4[%c0_2, %c0_3, %c0_4] : memref<2x1x256xf32, #tpu.memory_space<vmem>>, vector<1x1x256xf32>
    %15 = vector.shape_cast %14 : vector<1x1x256xf32> to vector<1x256xf32>
    %c0_5 = arith.constant 0 : index
    %c0_6 = arith.constant 0 : index
    %c0_7 = arith.constant 0 : index
    %16 = vector.load %arg5[%c0_5, %c0_6, %c0_7] : memref<2x1x256xf32, #tpu.memory_space<vmem>>, vector<1x1x256xf32>
    %17 = vector.shape_cast %16 : vector<1x1x256xf32> to vector<1x256xf32>
    %c0_8 = arith.constant 0 : index
    %c0_9 = arith.constant 0 : index
    %c0_10 = arith.constant 0 : index
    %18 = vector.load %arg3[%c0_8, %c0_9, %c0_10] : memref<2x3x256xf32, #tpu.memory_space<vmem>>, vector<1x3x256xf32>
    %19 = vector.shape_cast %18 : vector<1x3x256xf32> to vector<3x256xf32>
    %cst_11 = arith.constant 2.000000e+00 : f32
    %20 = arith.mulf %cst_11, %8 : f32
    %21 = vector.broadcast %20 : f32 to vector<1x256xf32>
    %22 = arith.mulf %21, %15 : vector<1x256xf32>
    %23 = vector.broadcast %11 : f32 to vector<1x256xf32>
    %24 = arith.mulf %23, %17 : vector<1x256xf32>
    %25 = arith.addf %22, %24 : vector<1x256xf32>
    %26 = vector.broadcast %8 : f32 to vector<1x256xf32>
    %27 = arith.subf %25, %26 : vector<1x256xf32>
    %28 = vector.broadcast %1 : vector<32x1xf32> to vector<32x256xf32>
    %29 = vector.broadcast %27 : vector<1x256xf32> to vector<32x256xf32>
    %30 = arith.mulf %28, %29 : vector<32x256xf32>
    %31 = vector.broadcast %13 : f32 to vector<32x1xf32>
    %32 = arith.mulf %31, %3 : vector<32x1xf32>
    %33 = arith.addf %2, %32 : vector<32x1xf32>
    %34 = vector.broadcast %33 : vector<32x1xf32> to vector<32x256xf32>
    %35 = arith.addf %30, %34 : vector<32x256xf32>
    %36 = vector.extract_strided_slice %0 {offsets = [0, 0], sizes = [32, 1], strides = [1, 1]} : vector<32x7xf32> to vector<32x1xf32>
    %37 = vector.extract_strided_slice %19 {offsets = [0, 0], sizes = [1, 256], strides = [1, 1]} : vector<3x256xf32> to vector<1x256xf32>
    %38 = vector.broadcast %36 : vector<32x1xf32> to vector<32x256xf32>
    %39 = vector.broadcast %37 : vector<1x256xf32> to vector<32x256xf32>
    %40 = arith.mulf %38, %39 : vector<32x256xf32>
    %41 = arith.addf %35, %40 : vector<32x256xf32>
    %42 = vector.extract_strided_slice %0 {offsets = [0, 1], sizes = [32, 1], strides = [1, 1]} : vector<32x7xf32> to vector<32x1xf32>
    %43 = vector.extract_strided_slice %19 {offsets = [1, 0], sizes = [1, 256], strides = [1, 1]} : vector<3x256xf32> to vector<1x256xf32>
    %44 = vector.broadcast %42 : vector<32x1xf32> to vector<32x256xf32>
    %45 = vector.broadcast %43 : vector<1x256xf32> to vector<32x256xf32>
    %46 = arith.mulf %44, %45 : vector<32x256xf32>
    %47 = arith.addf %41, %46 : vector<32x256xf32>
    %48 = vector.extract_strided_slice %0 {offsets = [0, 2], sizes = [32, 1], strides = [1, 1]} : vector<32x7xf32> to vector<32x1xf32>
    %49 = vector.extract_strided_slice %19 {offsets = [2, 0], sizes = [1, 256], strides = [1, 1]} : vector<3x256xf32> to vector<1x256xf32>
    %50 = vector.broadcast %48 : vector<32x1xf32> to vector<32x256xf32>
    %51 = vector.broadcast %49 : vector<1x256xf32> to vector<32x256xf32>
    %52 = arith.mulf %50, %51 : vector<32x256xf32>
    %53 = arith.addf %47, %52 : vector<32x256xf32>
    %cst_12 = arith.constant 0.000000e+00 : f32
    %54 = vector.broadcast %cst_12 : f32 to vector<32x256xf32>
    %55 = arith.maximumf %53, %54 : vector<32x256xf32>
    %56 = vector.broadcast %4 : vector<32x1xf32> to vector<32x256xf32>
    %57 = arith.mulf %56, %55 : vector<32x256xf32>
    %cst_13 = arith.constant dense<0.000000e+00> : vector<256xf32>
    %58 = vector.multi_reduction <add>, %57, %cst_13 [0] : vector<32x256xf32> to vector<256xf32>
    %59 = vector.shape_cast %58 : vector<256xf32> to vector<1x256xf32>
    %60 = vector.broadcast %5 : f32 to vector<1x256xf32>
    %61 = arith.addf %59, %60 : vector<1x256xf32>
    %62 = arith.subf %17, %61 : vector<1x256xf32>
    %63 = arith.mulf %62, %62 : vector<1x256xf32>
    %c1 = arith.constant 1 : index
    %64 = memref.load %arg1[%c1] : memref<2xi32, #tpu.memory_space<smem>>
    %65 = arith.index_cast %64 : i32 to index
    %66 = memref.load %arg2[%65] : memref<203xf32, #tpu.memory_space<smem>>
    %c101_i32_14 = arith.constant 101 : i32
    %67 = arith.addi %c101_i32_14, %64 : i32
    %68 = arith.index_cast %67 : i32 to index
    %69 = memref.load %arg2[%68] : memref<203xf32, #tpu.memory_space<smem>>
    %70 = arith.sitofp %64 : i32 to f32
    %cst_15 = arith.constant 0.00999999977 : f32
    %71 = arith.mulf %70, %cst_15 : f32
    %c1_16 = arith.constant 1 : index
    %c0_17 = arith.constant 0 : index
    %c0_18 = arith.constant 0 : index
    %72 = vector.load %arg4[%c1_16, %c0_17, %c0_18] : memref<2x1x256xf32, #tpu.memory_space<vmem>>, vector<1x1x256xf32>
    %73 = vector.shape_cast %72 : vector<1x1x256xf32> to vector<1x256xf32>
    %c1_19 = arith.constant 1 : index
    %c0_20 = arith.constant 0 : index
    %c0_21 = arith.constant 0 : index
    %74 = vector.load %arg5[%c1_19, %c0_20, %c0_21] : memref<2x1x256xf32, #tpu.memory_space<vmem>>, vector<1x1x256xf32>
    %75 = vector.shape_cast %74 : vector<1x1x256xf32> to vector<1x256xf32>
    %c1_22 = arith.constant 1 : index
    %c0_23 = arith.constant 0 : index
    %c0_24 = arith.constant 0 : index
    %76 = vector.load %arg3[%c1_22, %c0_23, %c0_24] : memref<2x3x256xf32, #tpu.memory_space<vmem>>, vector<1x3x256xf32>
    %77 = vector.shape_cast %76 : vector<1x3x256xf32> to vector<3x256xf32>
    %cst_25 = arith.constant 2.000000e+00 : f32
    %78 = arith.mulf %cst_25, %66 : f32
    %79 = vector.broadcast %78 : f32 to vector<1x256xf32>
    %80 = arith.mulf %79, %73 : vector<1x256xf32>
    %81 = vector.broadcast %69 : f32 to vector<1x256xf32>
    %82 = arith.mulf %81, %75 : vector<1x256xf32>
    %83 = arith.addf %80, %82 : vector<1x256xf32>
    %84 = vector.broadcast %66 : f32 to vector<1x256xf32>
    %85 = arith.subf %83, %84 : vector<1x256xf32>
    %86 = vector.broadcast %1 : vector<32x1xf32> to vector<32x256xf32>
    %87 = vector.broadcast %85 : vector<1x256xf32> to vector<32x256xf32>
    %88 = arith.mulf %86, %87 : vector<32x256xf32>
    %89 = vector.broadcast %71 : f32 to vector<32x1xf32>
    %90 = arith.mulf %89, %3 : vector<32x1xf32>
    %91 = arith.addf %2, %90 : vector<32x1xf32>
    %92 = vector.broadcast %91 : vector<32x1xf32> to vector<32x256xf32>
    %93 = arith.addf %88, %92 : vector<32x256xf32>
    %94 = vector.extract_strided_slice %0 {offsets = [0, 0], sizes = [32, 1], strides = [1, 1]} : vector<32x7xf32> to vector<32x1xf32>
    %95 = vector.extract_strided_slice %77 {offsets = [0, 0], sizes = [1, 256], strides = [1, 1]} : vector<3x256xf32> to vector<1x256xf32>
    %96 = vector.broadcast %94 : vector<32x1xf32> to vector<32x256xf32>
    %97 = vector.broadcast %95 : vector<1x256xf32> to vector<32x256xf32>
    %98 = arith.mulf %96, %97 : vector<32x256xf32>
    %99 = arith.addf %93, %98 : vector<32x256xf32>
    %100 = vector.extract_strided_slice %0 {offsets = [0, 1], sizes = [32, 1], strides = [1, 1]} : vector<32x7xf32> to vector<32x1xf32>
    %101 = vector.extract_strided_slice %77 {offsets = [1, 0], sizes = [1, 256], strides = [1, 1]} : vector<3x256xf32> to vector<1x256xf32>
    %102 = vector.broadcast %100 : vector<32x1xf32> to vector<32x256xf32>
    %103 = vector.broadcast %101 : vector<1x256xf32> to vector<32x256xf32>
    %104 = arith.mulf %102, %103 : vector<32x256xf32>
    %105 = arith.addf %99, %104 : vector<32x256xf32>
    %106 = vector.extract_strided_slice %0 {offsets = [0, 2], sizes = [32, 1], strides = [1, 1]} : vector<32x7xf32> to vector<32x1xf32>
    %107 = vector.extract_strided_slice %77 {offsets = [2, 0], sizes = [1, 256], strides = [1, 1]} : vector<3x256xf32> to vector<1x256xf32>
    %108 = vector.broadcast %106 : vector<32x1xf32> to vector<32x256xf32>
    %109 = vector.broadcast %107 : vector<1x256xf32> to vector<32x256xf32>
    %110 = arith.mulf %108, %109 : vector<32x256xf32>
    %111 = arith.addf %105, %110 : vector<32x256xf32>
    %cst_26 = arith.constant 0.000000e+00 : f32
    %112 = vector.broadcast %cst_26 : f32 to vector<32x256xf32>
    %113 = arith.maximumf %111, %112 : vector<32x256xf32>
    %114 = vector.broadcast %4 : vector<32x1xf32> to vector<32x256xf32>
    %115 = arith.mulf %114, %113 : vector<32x256xf32>
    %cst_27 = arith.constant dense<0.000000e+00> : vector<256xf32>
    %116 = vector.multi_reduction <add>, %115, %cst_27 [0] : vector<32x256xf32> to vector<256xf32>
    %117 = vector.shape_cast %116 : vector<256xf32> to vector<1x256xf32>
    %118 = vector.broadcast %5 : f32 to vector<1x256xf32>
    %119 = arith.addf %117, %118 : vector<1x256xf32>
    %120 = arith.subf %75, %119 : vector<1x256xf32>
    %121 = arith.mulf %120, %120 : vector<1x256xf32>
    %122 = arith.addf %63, %121 : vector<1x256xf32>
    %123 = vector.extract_strided_slice %122 {offsets = [0, 0], sizes = [1, 128], strides = [1, 1]} : vector<1x256xf32> to vector<1x128xf32>
    %124 = vector.extract_strided_slice %122 {offsets = [0, 128], sizes = [1, 128], strides = [1, 1]} : vector<1x256xf32> to vector<1x128xf32>
    %125 = arith.addf %123, %124 : vector<1x128xf32>
    %c0_28 = arith.constant 0 : index
    %c0_29 = arith.constant 0 : index
    %126 = vector.load %arg7[%c0_28, %c0_29] : memref<1x128xf32, #tpu.memory_space<vmem>>, vector<1x128xf32>
    tpu.vector_store %arg7[%c0_28, %c0_29], %125 {strides = array<i32>} : memref<1x128xf32, #tpu.memory_space<vmem>>, vector<1x128xf32>,
    return
  }
  func.func @transform_0(%arg0: i32, %arg1: memref<2xi32, #tpu.memory_space<smem>>, %arg2: memref<203xf32, #tpu.memory_space<smem>>) -> (i32, i32, i32) {
    %c0_i32 = arith.constant 0 : i32
    %c0_i32_0 = arith.constant 0 : i32
    %c0_i32_1 = arith.constant 0 : i32
    %c0_i32_2 = arith.constant 0 : i32
    return %c0_i32, %c0_i32_0, %c0_i32_1 : i32, i32, i32
  }
  func.func @transform_1(%arg0: i32, %arg1: memref<2xi32, #tpu.memory_space<smem>>, %arg2: memref<203xf32, #tpu.memory_space<smem>>) -> (i32, i32, i32) {
    %c0_i32 = arith.constant 0 : i32
    %c0_i32_0 = arith.constant 0 : i32
    %c0_i32_1 = arith.constant 0 : i32
    %c0_i32_2 = arith.constant 0 : i32
    return %c0_i32, %c0_i32_0, %c0_i32_1 : i32, i32, i32
  }
  func.func @transform_2(%arg0: i32, %arg1: memref<2xi32, #tpu.memory_space<smem>>, %arg2: memref<203xf32, #tpu.memory_space<smem>>) -> (i32, i32, i32) {
    %c0_i32 = arith.constant 0 : i32
    %c0_i32_0 = arith.constant 0 : i32
    %c0_i32_1 = arith.constant 0 : i32
    %c0_i32_2 = arith.constant 0 : i32
    return %c0_i32, %c0_i32_0, %c0_i32_1 : i32, i32, i32
  }
  func.func @transform_3(%arg0: i32, %arg1: memref<2xi32, #tpu.memory_space<smem>>, %arg2: memref<203xf32, #tpu.memory_space<smem>>) -> (i32, i32) {
    %c0_i32 = arith.constant 0 : i32
    %c0_i32_0 = arith.constant 0 : i32
    %c0_i32_1 = arith.constant 0 : i32
    return %c0_i32, %c0_i32_0 : i32, i32
  }
  func.func @transform_4(%arg0: i32, %arg1: memref<2xi32, #tpu.memory_space<smem>>, %arg2: memref<203xf32, #tpu.memory_space<smem>>) -> (i32, i32) {
    %c0_i32 = arith.constant 0 : i32
    %c0_i32_0 = arith.constant 0 : i32
    %c0_i32_1 = arith.constant 0 : i32
    return %c0_i32, %c0_i32_0 : i32, i32
  }
}

</mosaic_0001>

<llo_original>
// kernel: ddpm_forward_loss.1
$region0: #{ddpm_forward_loss.1}
  #allocation0 [shape = 'u32[]', space=smem, size = 0x4, offset = 0x4, fixed_abs, tag = 'smem constant byte address 0x4 - core index']
  #allocation1 [shape = 'u32[72,128]{1,0:T(1,128)}', space=vmem, size = 0x9000, scoped, tag = 'internal scratch']
  #allocation2 [shape = 's32[1]{0}', space=sflag, size = 0x4, scoped, tag = 'scoped memory for ddpm_forward_loss.1']
  #allocation3 [shape = 'u8[512]{0}', space=smem, size = 0x200, scoped, tag = 'prefetched SMEM operand 0']
  #allocation4 [shape = 'u8[1024]{0}', space=smem, size = 0x400, scoped, tag = 'prefetched SMEM operand 1']
  %s0 = inlined_call_operand.vmem [shape: s32[2], index: 0, kind: input, shape index: {}]
  %s1 = inlined_call_operand.vmem [shape: f32[203], index: 1, kind: input, shape index: {}]
  %s2 = inlined_call_operand.vmem [shape: f32[2,3,256], index: 2, kind: input, shape index: {}]
  %s3 = inlined_call_operand.vmem [shape: f32[2,1,256], index: 3, kind: input, shape index: {}]
  %s4 = inlined_call_operand.vmem [shape: f32[2,1,256], index: 4, kind: input, shape index: {}]
  %s5 = inlined_call_operand.vmem [shape: f32[32,7], index: 5, kind: input, shape index: {}]
  %s6 = inlined_call_operand.vmem [shape: f32[1,128], index: 6, kind: output, shape index: {}]
  %s7 = sld [smem:[#allocation0]]
  $region26: #{ddpm_forward_loss.1} parent=0
    _
  %s9 = ssub.s32 1, %s7
  %s10 = scalar_select 0, %s9, %s7
  %s12 = sshll.u32 %s0, 4
  %s13 = int_to_ptr.vmem [resolvable:$true] %s12
  %15 = dma.vmem_to_smem %s13, 16, [#allocation3], [#allocation2]
  %s17 = sshll.u32 %s1, 4
  %s18 = int_to_ptr.vmem [resolvable:$true] %s17
  %20 = dma.vmem_to_smem %s18, 32, [#allocation4], [#allocation2]
  %22 = dma.done [#allocation2], 48
  %23 = sfence
  // Predicated region
  $region2: #{ddpm_forward_loss.1} parent=0 // pred_check
    _
  $region3: #{ddpm_forward_loss.1} parent=0 // pred_check_branch
    %25 = sbr.rel (0) target = $region5
  $region4: #{ddpm_forward_loss.1} parent=0 // pred_region
    _
  $region5: #{ddpm_forward_loss.1} parent=0 // pred_fallthru
    _
  // Predicated region
  $region6: #{ddpm_forward_loss.1} parent=0 // pred_check
    _
  $region7: #{ddpm_forward_loss.1} parent=0 // pred_check_branch
    %27 = sbr.rel (0) target = $region9
  $region8: #{ddpm_forward_loss.1} parent=0 // pred_region
    _
  $region9: #{ddpm_forward_loss.1} parent=0 // pred_fallthru
    _
  // Predicated region
  $region10: #{ddpm_forward_loss.1} parent=0 // pred_check
    _
  $region11: #{ddpm_forward_loss.1} parent=0 // pred_check_branch
    %29 = sbr.rel (0) target = $region13
  $region12: #{ddpm_forward_loss.1} parent=0 // pred_region
    _
  $region13: #{ddpm_forward_loss.1} parent=0 // pred_fallthru
    _
  // Predicated region
  $region14: #{ddpm_forward_loss.1} parent=0 // pred_check
    _
  $region15: #{ddpm_forward_loss.1} parent=0 // pred_check_branch
    %31 = sbr.rel (0) target = $region17
  $region16: #{ddpm_forward_loss.1} parent=0 // pred_region
    _
  $region17: #{ddpm_forward_loss.1} parent=0 // pred_fallthru
    _
  %v32 = vld [vmem:[%s5] sm:$0xff]
  %v33 = vld [vmem:[%s5 + $0x8] sm:$0xff]
  %v34 = vld [vmem:[%s5 + $0x10] sm:$0xff]
  %v35 = vld [vmem:[%s5 + $0x18] sm:$0xff]
  %s36 = sld [smem:[#allocation4 + $0xca]]
  %s37 = sld [smem:[#allocation3]]
  %s38 = sld [smem:[#allocation4 + %s37]]
  %s39 = sadd.s32 %s37, 101
  %s40 = sld [smem:[#allocation4 + %s39]]
  %s41 = scvt.s32.f32 %s37
  %s42 = smul.f32 %s41, 0.01
  %v43 = vld [vmem:[%s3] sm:$0x3]
  %v44 = vld [vmem:[%s4] sm:$0x3]
  %v45 = vld [vmem:[%s2] sm:$0x77]
  %s46 = smul.f32 %s38, 2.0
  %v47 = vstv %s46
  %v48 = vmul.f32 %v47, %v43
  %v49 = vstv %s40
  %v50 = vmul.f32 %v49, %v44
  %v51 = vadd.f32 %v48, %v50
  %v52 = vstv %s38
  %v53 = vsub.f32 %v51, %v52
  %55 = vset.pattern.permute.xlu0 3
  %56 = vperm.xlu0 %55, %v32
  %v57 = vpop.permute.xlu0 %56
  %60 = vset.pattern.permute.xlu0 3
  %61 = vperm.xlu0 %60, %v33
  %v62 = vpop.permute.xlu0 %61
  %65 = vset.pattern.permute.xlu0 3
  %66 = vperm.xlu0 %65, %v34
  %v67 = vpop.permute.xlu0 %66
  %70 = vset.pattern.permute.xlu0 3
  %71 = vperm.xlu0 %70, %v35
  %v72 = vpop.permute.xlu0 %71
  %v75 = vperm.slane %v53, 0
  %v76 = vperm.slane %v53, 1
  %v79 = vmul.f32 %v57, %v75
  %v80 = vmul.f32 %v57, %v76
  %v81 = vmul.f32 %v62, %v75
  %v82 = vmul.f32 %v62, %v76
  %v83 = vmul.f32 %v67, %v75
  %v84 = vmul.f32 %v67, %v76
  %v85 = vmul.f32 %v72, %v75
  %v86 = vmul.f32 %v72, %v76
  %v87 = vstv %s42
  %v88 = vmul.f32 %v87, %v32
  %v89 = vmul.f32 %v87, %v33
  %v90 = vmul.f32 %v87, %v34
  %v91 = vmul.f32 %v87, %v35
  %96 = vrot.lane.b32.xlu0 %v88, 127
  %v97 = vpop.permute.xlu0 %96
  %98 = vrot.lane.b32.xlu0 %v89, 127
  %v99 = vpop.permute.xlu0 %98
  %100 = vrot.lane.b32.xlu0 %v90, 127
  %v101 = vpop.permute.xlu0 %100
  %102 = vrot.lane.b32.xlu0 %v91, 127
  %v103 = vpop.permute.xlu0 %102
  %v108 = vadd.f32 %v32, %v97
  %v109 = vadd.f32 %v33, %v99
  %v110 = vadd.f32 %v34, %v101
  %v111 = vadd.f32 %v35, %v103
  %113 = vset.pattern.permute.xlu0 4
  %114 = vperm.xlu0 %113, %v108
  %v115 = vpop.permute.xlu0 %114
  %118 = vset.pattern.permute.xlu0 4
  %119 = vperm.xlu0 %118, %v109
  %v120 = vpop.permute.xlu0 %119
  %123 = vset.pattern.permute.xlu0 4
  %124 = vperm.xlu0 %123, %v110
  %v125 = vpop.permute.xlu0 %124
  %128 = vset.pattern.permute.xlu0 4
  %129 = vperm.xlu0 %128, %v111
  %v130 = vpop.permute.xlu0 %129
  %v132 = vadd.f32 %v79, %v115
  %v133 = vadd.f32 %v80, %v115
  %v134 = vadd.f32 %v81, %v120
  %v135 = vadd.f32 %v82, %v120
  %v136 = vadd.f32 %v83, %v125
  %v137 = vadd.f32 %v84, %v125
  %v138 = vadd.f32 %v85, %v130
  %v139 = vadd.f32 %v86, %v130
  %140 = vset.pattern.permute.xlu0 0
  %141 = vperm.xlu0 %140, %v32
  %v142 = vpop.permute.xlu0 %141
  %144 = vset.pattern.permute.xlu0 0
  %145 = vperm.xlu0 %144, %v33
  %v146 = vpop.permute.xlu0 %145
  %148 = vset.pattern.permute.xlu0 0
  %149 = vperm.xlu0 %148, %v34
  %v150 = vpop.permute.xlu0 %149
  %152 = vset.pattern.permute.xlu0 0
  %153 = vperm.xlu0 %152, %v35
  %v154 = vpop.permute.xlu0 %153
  %v157 = vperm.slane %v45, 0
  %v158 = vperm.slane %v45, 4
  %v161 = vperm.slane %v157, 0
  %v162 = vperm.slane %v158, 0
  %v163 = vmul.f32 %v142, %v161
  %v164 = vmul.f32 %v142, %v162
  %v165 = vmul.f32 %v146, %v161
  %v166 = vmul.f32 %v146, %v162
  %v167 = vmul.f32 %v150, %v161
  %v168 = vmul.f32 %v150, %v162
  %v169 = vmul.f32 %v154, %v161
  %v170 = vmul.f32 %v154, %v162
  %v171 = vadd.f32 %v132, %v163
  %v172 = vadd.f32 %v133, %v164
  %v173 = vadd.f32 %v134, %v165
  %v174 = vadd.f32 %v135, %v166
  %v175 = vadd.f32 %v136, %v167
  %v176 = vadd.f32 %v137, %v168
  %v177 = vadd.f32 %v138, %v169
  %v178 = vadd.f32 %v139, %v170
  %179 = vset.pattern.permute.xlu0 1
  %180 = vperm.xlu0 %179, %v32
  %v181 = vpop.permute.xlu0 %180
  %183 = vset.pattern.permute.xlu0 1
  %184 = vperm.xlu0 %183, %v33
  %v185 = vpop.permute.xlu0 %184
  %187 = vset.pattern.permute.xlu0 1
  %188 = vperm.xlu0 %187, %v34
  %v189 = vpop.permute.xlu0 %188
  %191 = vset.pattern.permute.xlu0 1
  %192 = vperm.xlu0 %191, %v35
  %v193 = vpop.permute.xlu0 %192
  %v195 = vperm.slane %v45, 1
  %v196 = vperm.slane %v45, 5
  %v199 = vperm.slane %v195, 1
  %v200 = vperm.slane %v196, 1
  %v201 = vmul.f32 %v181, %v199
  %v202 = vmul.f32 %v181, %v200
  %v203 = vmul.f32 %v185, %v199
  %v204 = vmul.f32 %v185, %v200
  %v205 = vmul.f32 %v189, %v199
  %v206 = vmul.f32 %v189, %v200
  %v207 = vmul.f32 %v193, %v199
  %v208 = vmul.f32 %v193, %v200
  %v209 = vadd.f32 %v171, %v201
  %v210 = vadd.f32 %v172, %v202
  %v211 = vadd.f32 %v173, %v203
  %v212 = vadd.f32 %v174, %v204
  %v213 = vadd.f32 %v175, %v205
  %v214 = vadd.f32 %v176, %v206
  %v215 = vadd.f32 %v177, %v207
  %v216 = vadd.f32 %v178, %v208
  %217 = vset.pattern.permute.xlu0 2
  %218 = vperm.xlu0 %217, %v32
  %v219 = vpop.permute.xlu0 %218
  %221 = vset.pattern.permute.xlu0 2
  %222 = vperm.xlu0 %221, %v33
  %v223 = vpop.permute.xlu0 %222
  %225 = vset.pattern.permute.xlu0 2
  %226 = vperm.xlu0 %225, %v34
  %v227 = vpop.permute.xlu0 %226
  %229 = vset.pattern.permute.xlu0 2
  %230 = vperm.xlu0 %229, %v35
  %v231 = vpop.permute.xlu0 %230
  %v233 = vperm.slane %v45, 2
  %v234 = vperm.slane %v45, 6
  %v237 = vperm.slane %v233, 2
  %v238 = vperm.slane %v234, 2
  %v239 = vmul.f32 %v219, %v237
  %v240 = vmul.f32 %v219, %v238
  %v241 = vmul.f32 %v223, %v237
  %v242 = vmul.f32 %v223, %v238
  %v243 = vmul.f32 %v227, %v237
  %v244 = vmul.f32 %v227, %v238
  %v245 = vmul.f32 %v231, %v237
  %v246 = vmul.f32 %v231, %v238
  %v247 = vadd.f32 %v209, %v239
  %v248 = vadd.f32 %v210, %v240
  %v249 = vadd.f32 %v211, %v241
  %v250 = vadd.f32 %v212, %v242
  %v251 = vadd.f32 %v213, %v243
  %v252 = vadd.f32 %v214, %v244
  %v253 = vadd.f32 %v215, %v245
  %v254 = vadd.f32 %v216, %v246
  %v255 = vmax.f32 %v247, 0.0
  %v256 = vmax.f32 %v248, 0.0
  %v257 = vmax.f32 %v249, 0.0
  %v258 = vmax.f32 %v250, 0.0
  %v259 = vmax.f32 %v251, 0.0
  %v260 = vmax.f32 %v252, 0.0
  %v261 = vmax.f32 %v253, 0.0
  %v262 = vmax.f32 %v254, 0.0
  %263 = vset.pattern.permute.xlu0 6
  %264 = vperm.xlu0 %263, %v32
  %v265 = vpop.permute.xlu0 %264
  %267 = vset.pattern.permute.xlu0 6
  %268 = vperm.xlu0 %267, %v33
  %v269 = vpop.permute.xlu0 %268
  %271 = vset.pattern.permute.xlu0 6
  %272 = vperm.xlu0 %271, %v34
  %v273 = vpop.permute.xlu0 %272
  %275 = vset.pattern.permute.xlu0 6
  %276 = vperm.xlu0 %275, %v35
  %v277 = vpop.permute.xlu0 %276
  %v279 = vmul.f32 %v265, %v255
  %v280 = vmul.f32 %v265, %v256
  %v281 = vmul.f32 %v269, %v257
  %v282 = vmul.f32 %v269, %v258
  %v283 = vmul.f32 %v273, %v259
  %v284 = vmul.f32 %v273, %v260
  %v285 = vmul.f32 %v277, %v261
  %v286 = vmul.f32 %v277, %v262
  %v287 = vadd.f32 %v279, %v281
  %v288 = vadd.f32 %v287, %v283
  %v289 = vadd.f32 %v288, %v285
  %v290 = vrot.slane %v289, 4
  %v291 = vadd.f32 %v289, %v290
  %v292 = vrot.slane %v291, 2
  %v293 = vadd.f32 %v291, %v292
  %v294 = vrot.slane %v293, 1
  %v295 = vadd.f32 %v293, %v294
  %v296 = vadd.f32 %v280, %v282
  %v297 = vadd.f32 %v296, %v284
  %v298 = vadd.f32 %v297, %v286
  %v299 = vrot.slane %v298, 4
  %v300 = vadd.f32 %v298, %v299
  %v301 = vrot.slane %v300, 2
  %v302 = vadd.f32 %v300, %v301
  %v303 = vrot.slane %v302, 1
  %v304 = vadd.f32 %v302, %v303
  %v305 = vstv %s36
  %v306 = vadd.f32 %v295, %v305
  %v307 = vadd.f32 %v304, %v305
  %v310 = vrot.slane %v307, 7
  %vm311 = vcmask 1040384
  %v312 = vsel %vm311, %v306, %v310
  %v314 = vsub.f32 %v44, %v312
  %v315 = vmul.f32 %v314, %v314
  %s316 = sld [smem:[#allocation3 + $0x1]]
  %s317 = sld [smem:[#allocation4 + %s316]]
  %s318 = sadd.s32 %s316, 101
  %s319 = sld [smem:[#allocation4 + %s318]]
  %s320 = scvt.s32.f32 %s316
  %s321 = smul.f32 %s320, 0.01
  %s322 = scalar_lea.vmem %s3, 2
  %v323 = vld [vmem:[%s322] sm:$0x3]
  %s324 = scalar_lea.vmem %s4, 2
  %v325 = vld [vmem:[%s324] sm:$0x3]
  %s326 = scalar_lea.vmem %s2, 8
  %v327 = vld [vmem:[%s326] sm:$0x77]
  %s328 = smul.f32 %s317, 2.0
  %v329 = vstv %s328
  %v330 = vmul.f32 %v329, %v323
  %v331 = vstv %s319
  %v332 = vmul.f32 %v331, %v325
  %v333 = vadd.f32 %v330, %v332
  %v334 = vstv %s317
  %v335 = vsub.f32 %v333, %v334
  %v337 = vperm.slane %v335, 0
  %v338 = vperm.slane %v335, 1
  %v341 = vmul.f32 %v57, %v337
  %v342 = vmul.f32 %v57, %v338
  %v343 = vmul.f32 %v62, %v337
  %v344 = vmul.f32 %v62, %v338
  %v345 = vmul.f32 %v67, %v337
  %v346 = vmul.f32 %v67, %v338
  %v347 = vmul.f32 %v72, %v337
  %v348 = vmul.f32 %v72, %v338
  %v349 = vstv %s321
  %v350 = vmul.f32 %v349, %v32
  %v351 = vmul.f32 %v349, %v33
  %v352 = vmul.f32 %v349, %v34
  %v353 = vmul.f32 %v349, %v35
  %358 = vrot.lane.b32.xlu0 %v350, 127
  %v359 = vpop.permute.xlu0 %358
  %360 = vrot.lane.b32.xlu0 %v351, 127
  %v361 = vpop.permute.xlu0 %360
  %362 = vrot.lane.b32.xlu0 %v352, 127
  %v363 = vpop.permute.xlu0 %362
  %364 = vrot.lane.b32.xlu0 %v353, 127
  %v365 = vpop.permute.xlu0 %364
  %v370 = vadd.f32 %v32, %v359
  %v371 = vadd.f32 %v33, %v361
  %v372 = vadd.f32 %v34, %v363
  %v373 = vadd.f32 %v35, %v365
  %375 = vset.pattern.permute.xlu0 4
  %376 = vperm.xlu0 %375, %v370
  %v377 = vpop.permute.xlu0 %376
  %380 = vset.pattern.permute.xlu0 4
  %381 = vperm.xlu0 %380, %v371
  %v382 = vpop.permute.xlu0 %381
  %385 = vset.pattern.permute.xlu0 4
  %386 = vperm.xlu0 %385, %v372
  %v387 = vpop.permute.xlu0 %386
  %390 = vset.pattern.permute.xlu0 4
  %391 = vperm.xlu0 %390, %v373
  %v392 = vpop.permute.xlu0 %391
  %v394 = vadd.f32 %v341, %v377
  %v395 = vadd.f32 %v342, %v377
  %v396 = vadd.f32 %v343, %v382
  %v397 = vadd.f32 %v344, %v382
  %v398 = vadd.f32 %v345, %v387
  %v399 = vadd.f32 %v346, %v387
  %v400 = vadd.f32 %v347, %v392
  %v401 = vadd.f32 %v348, %v392
  %v403 = vperm.slane %v327, 0
  %v404 = vperm.slane %v327, 4
  %v407 = vperm.slane %v403, 0
  %v408 = vperm.slane %v404, 0
  %v409 = vmul.f32 %v142, %v407
  %v410 = vmul.f32 %v142, %v408
  %v411 = vmul.f32 %v146, %v407
  %v412 = vmul.f32 %v146, %v408
  %v413 = vmul.f32 %v150, %v407
  %v414 = vmul.f32 %v150, %v408
  %v415 = vmul.f32 %v154, %v407
  %v416 = vmul.f32 %v154, %v408
  %v417 = vadd.f32 %v394, %v409
  %v418 = vadd.f32 %v395, %v410
  %v419 = vadd.f32 %v396, %v411
  %v420 = vadd.f32 %v397, %v412
  %v421 = vadd.f32 %v398, %v413
  %v422 = vadd.f32 %v399, %v414
  %v423 = vadd.f32 %v400, %v415
  %v424 = vadd.f32 %v401, %v416
  %v425 = vperm.slane %v327, 1
  %v426 = vperm.slane %v327, 5
  %v429 = vperm.slane %v425, 1
  %v430 = vperm.slane %v426, 1
  %v431 = vmul.f32 %v181, %v429
  %v432 = vmul.f32 %v181, %v430
  %v433 = vmul.f32 %v185, %v429
  %v434 = vmul.f32 %v185, %v430
  %v435 = vmul.f32 %v189, %v429
  %v436 = vmul.f32 %v189, %v430
  %v437 = vmul.f32 %v193, %v429
  %v438 = vmul.f32 %v193, %v430
  %v439 = vadd.f32 %v417, %v431
  %v440 = vadd.f32 %v418, %v432
  %v441 = vadd.f32 %v419, %v433
  %v442 = vadd.f32 %v420, %v434
  %v443 = vadd.f32 %v421, %v435
  %v444 = vadd.f32 %v422, %v436
  %v445 = vadd.f32 %v423, %v437
  %v446 = vadd.f32 %v424, %v438
  %v447 = vperm.slane %v327, 2
  %v448 = vperm.slane %v327, 6
  %v451 = vperm.slane %v447, 2
  %v452 = vperm.slane %v448, 2
  %v453 = vmul.f32 %v219, %v451
  %v454 = vmul.f32 %v219, %v452
  %v455 = vmul.f32 %v223, %v451
  %v456 = vmul.f32 %v223, %v452
  %v457 = vmul.f32 %v227, %v451
  %v458 = vmul.f32 %v227, %v452
  %v459 = vmul.f32 %v231, %v451
  %v460 = vmul.f32 %v231, %v452
  %v461 = vadd.f32 %v439, %v453
  %v462 = vadd.f32 %v440, %v454
  %v463 = vadd.f32 %v441, %v455
  %v464 = vadd.f32 %v442, %v456
  %v465 = vadd.f32 %v443, %v457
  %v466 = vadd.f32 %v444, %v458
  %v467 = vadd.f32 %v445, %v459
  %v468 = vadd.f32 %v446, %v460
  %v469 = vmax.f32 %v461, 0.0
  %v470 = vmax.f32 %v462, 0.0
  %v471 = vmax.f32 %v463, 0.0
  %v472 = vmax.f32 %v464, 0.0
  %v473 = vmax.f32 %v465, 0.0
  %v474 = vmax.f32 %v466, 0.0
  %v475 = vmax.f32 %v467, 0.0
  %v476 = vmax.f32 %v468, 0.0
  %v477 = vmul.f32 %v265, %v469
  %v478 = vmul.f32 %v265, %v470
  %v479 = vmul.f32 %v269, %v471
  %v480 = vmul.f32 %v269, %v472
  %v481 = vmul.f32 %v273, %v473
  %v482 = vmul.f32 %v273, %v474
  %v483 = vmul.f32 %v277, %v475
  %v484 = vmul.f32 %v277, %v476
  %v485 = vadd.f32 %v477, %v479
  %v486 = vadd.f32 %v485, %v481
  %v487 = vadd.f32 %v486, %v483
  %v488 = vrot.slane %v487, 4
  %v489 = vadd.f32 %v487, %v488
  %v490 = vrot.slane %v489, 2
  %v491 = vadd.f32 %v489, %v490
  %v492 = vrot.slane %v491, 1
  %v493 = vadd.f32 %v491, %v492
  %v494 = vadd.f32 %v478, %v480
  %v495 = vadd.f32 %v494, %v482
  %v496 = vadd.f32 %v495, %v484
  %v497 = vrot.slane %v496, 4
  %v498 = vadd.f32 %v496, %v497
  %v499 = vrot.slane %v498, 2
  %v500 = vadd.f32 %v498, %v499
  %v501 = vrot.slane %v500, 1
  %v502 = vadd.f32 %v500, %v501
  %v503 = vadd.f32 %v493, %v305
  %v504 = vadd.f32 %v502, %v305
  %v507 = vrot.slane %v504, 7
  %v508 = vsel %vm311, %v503, %v507
  %v510 = vsub.f32 %v325, %v508
  %v511 = vmul.f32 %v510, %v510
  %v512 = vadd.f32 %v315, %v511
  %v514 = vrot.slane %v512, 1
  %v516 = vadd.f32 %v512, %v514
  %517 = vst [vmem:[%s6] sm:$0x1] %v516
  // Predicated region
  $region18: #{ddpm_forward_loss.1} parent=0 // pred_check
    _
  $region19: #{ddpm_forward_loss.1} parent=0 // pred_check_branch
    %519 = sbr.rel (0) target = $region21
  $region20: #{ddpm_forward_loss.1} parent=0 // pred_region
    _
  $region21: #{ddpm_forward_loss.1} parent=0 // pred_fallthru
    _
  // Predicated region
  $region22: #{ddpm_forward_loss.1} parent=0 // pred_check
    _
  $region23: #{ddpm_forward_loss.1} parent=0 // pred_check_branch
    %521 = sbr.rel (0) target = $region25
  $region24: #{ddpm_forward_loss.1} parent=0 // pred_region
    _
  $region25: #{ddpm_forward_loss.1} parent=0 // pred_fallthru
    _

</llo_original>
